<compile_context>
chip_gen: v6e
topology: v6e:2x2x1
jax: 0.10.0
libtpu: 0.0.40
codegen_flags: <defaults>
</compile_context>

<pallas_src>
import functools

import jax
import jax.numpy as jnp
from jax import lax
from jax.experimental import pallas as pl
from jax.experimental.pallas import tpu as pltpu


def _round_up(x, m):
    return ((x + m - 1) // m) * m


def gauss_dynamics_kernel(x_ref, w1_ref, b1_ref, wh_ref, bh_ref, out_ref, *,
                          out_dims):
    # shared_l1 + ReLU.  MXU accumulation in f32 regardless of input dtype.
    y1 = jnp.dot(x_ref[...], w1_ref[...], preferred_element_type=jnp.float32)
    y1 = jnp.maximum(y1 + b1_ref[...], 0.0)

    # Fused (and lane-padded) [mu | sigma | 0-pad] head: a single matmul.
    h = jnp.dot(y1.astype(wh_ref.dtype), wh_ref[...],
                preferred_element_type=jnp.float32) + bh_ref[...]

    head_width = h.shape[-1]
    if out_dims % 128 == 0 and head_width == 2 * out_dims:
        # Lane-aligned split: transcendentals (EUP) only on the sigma half,
        # and both stores are full-lane-width aligned stores.
        out_ref[:, :out_dims] = jnp.maximum(h[:, :out_dims], 0.0)
        out_ref[:, out_dims:] = jnp.exp(jax.nn.sigmoid(h[:, out_dims:]))
    else:
        # Lane-mask select keeps the write path lane-dense (VPU/EUP only, no
        # relayout, no sub-128 stores).  Padding lanes (col >= 2*out_dims)
        # just hold exp(sigmoid(0)) and are sliced off in the wrapper.
        col = lax.broadcasted_iota(jnp.int32, h.shape, 1)
        out_ref[...] = jnp.where(col < out_dims,
                                 jnp.maximum(h, 0.0),
                                 jnp.exp(jax.nn.sigmoid(h)))


def pack_params(params, *, compute_dtype=jnp.float32):
    """One-time packing (hoisted out of forward): fuse + lane-pad the heads."""
    w1, b1, wmu, bmu, ws, bs = params
    hidden, out_dims = wmu.shape
    head_width = max(128, _round_up(2 * out_dims, 128))   # lane-dense output

    wh = jnp.zeros((hidden, head_width), jnp.float32)
    wh = wh.at[:, :out_dims].set(wmu).at[:, out_dims:2 * out_dims].set(ws)
    bh = jnp.zeros((1, head_width), jnp.float32)
    bh = bh.at[:, :out_dims].set(bmu).at[:, out_dims:2 * out_dims].set(bs)

    return {
        "w1": w1.astype(compute_dtype),
        "b1": b1.astype(jnp.float32),     # biases stay f32 (added post-accum)
        "wh": wh.astype(compute_dtype),
        "bh": bh,
        "out_dims": out_dims,
    }


def gauss_dynamics_forward(x, packed, *, block_batch=None):
    """Returns (mu, cov_mat) matching Gauss_Dynamics_Model(diagonal=True)."""
    w1, b1, wh, bh = packed["w1"], packed["b1"], packed["wh"], packed["bh"]
    D = packed["out_dims"]
    B, in_dims = x.shape
    hidden = w1.shape[1]
    head_width = wh.shape[1]

    x = x.astype(w1.dtype)

    # Tile choice: single grid step at small B, 512-row tiles at large B.
    if block_batch is None:
        block_batch = _round_up(B, 8) if B <= 1024 else 512
    block_batch = min(_round_up(block_batch, 8), _round_up(B, 8))

    # Ragged-batch handling: zero-pad B to a tile multiple, slice back after.
    Bp = _round_up(B, block_batch)
    if Bp != B:
        x = jnp.pad(x, ((0, Bp - B), (0, 0)))

    grid = (Bp // block_batch,)

    # Rough VMEM footprint: double-buffered x/out tiles + resident weights +
    # the (block_batch, hidden) y1 intermediate.  Only request a larger scoped
    # limit when the v5e default (16 MiB) would be tight; cap at 64 MiB so the
    # same tile choice remains valid on v7x's smaller physical VMEM.
    elt = jnp.dtype(w1.dtype).itemsize
    vmem_bytes = (2 * block_batch * in_dims * elt
                  + 2 * block_batch * head_width * 4
                  + (w1.size + wh.size) * elt + (b1.size + bh.size) * 4
                  + block_batch * hidden * 4)
    if vmem_bytes > 12 * 1024 * 1024:
        compiler_params = pltpu.CompilerParams(
            dimension_semantics=("parallel",),
            vmem_limit_bytes=min(64 * 1024 * 1024, int(2 * vmem_bytes)))
    else:
        compiler_params = pltpu.CompilerParams(
            dimension_semantics=("parallel",))

    # NOTE: weight/bias specs use a constant index_map, so they are DMA'd once
    # and stay VMEM-resident across the grid.  For hidden in the 1-4K range,
    # add pipeline_mode=pl.Buffered(1) to these specs to drop the unused
    # second pipeline buffer; at hidden=32 it is negligible.
    out = pl.pallas_call(
        functools.partial(gauss_dynamics_kernel, out_dims=D),
        grid=grid,
        in_specs=[
            pl.BlockSpec((block_batch, in_dims), lambda i: (i, 0)),  # x tile
            pl.BlockSpec(w1.shape, lambda i: (0, 0)),                # resident
            pl.BlockSpec(b1.shape, lambda i: (0, 0)),
            pl.BlockSpec(wh.shape, lambda i: (0, 0)),
            pl.BlockSpec(bh.shape, lambda i: (0, 0)),
        ],
        out_specs=pl.BlockSpec((block_batch, head_width), lambda i: (i, 0)),
        out_shape=jax.ShapeDtypeStruct((Bp, head_width), jnp.float32),
        compiler_params=compiler_params,
    )(x, w1, b1, wh, bh)

    mu = out[:B, :D]
    sigma = out[:B, D:2 * D]
    # diag_embed stays in the wrapper: XLA handles it trivially and the kernel
    # avoids the quadratic, mostly-zero (B, D, D) store.
    cov = jax.vmap(jnp.diag)(sigma)
    return mu, cov


def init_params(key, input_dims, hidden_units, output_dims):
    ks = jax.random.split(key, 6)
    scale1 = 1.0 / jnp.sqrt(input_dims)
    scale2 = 1.0 / jnp.sqrt(hidden_units)
    # Weights stored pre-transposed as (in_features, out_features) so the
    # kernel computes x @ W + b == PyTorch's x W^T + b.
    w1 = jax.random.uniform(ks[0], (input_dims, hidden_units), jnp.float32,
                            -scale1, scale1)
    b1 = jax.random.uniform(ks[1], (1, hidden_units), jnp.float32, -scale1, scale1)
    wmu = jax.random.uniform(ks[2], (hidden_units, output_dims), jnp.float32,
                             -scale2, scale2)
    bmu = jax.random.uniform(ks[3], (1, output_dims), jnp.float32, -scale2, scale2)
    ws = jax.random.uniform(ks[4], (hidden_units, output_dims), jnp.float32,
                            -scale2, scale2)
    bs = jax.random.uniform(ks[5], (1, output_dims), jnp.float32, -scale2, scale2)
    return (w1, b1, wmu, bmu, ws, bs)


def ref_forward(x, params):
    """Pure-JAX reference mirroring the PyTorch module (diagonal=True)."""
    w1, b1, wmu, bmu, ws, bs = params
    y1 = jax.nn.relu(x @ w1 + b1)
    mu = jax.nn.relu(y1 @ wmu + bmu)
    sigma = jnp.exp(jax.nn.sigmoid(y1 @ ws + bs))
    cov = jax.vmap(jnp.diag)(sigma)
    return mu, cov


if __name__ == "__main__":
    batch = 16
    input_dims = 16
    hidden_units = 32
    output_dims = 8

    key = jax.random.PRNGKey(0)
    k_x, k_p = jax.random.split(key)
    x = jax.random.normal(k_x, (batch, input_dims), jnp.float32)
    params = init_params(k_p, input_dims, hidden_units, output_dims)

    packed = pack_params(params)                     # one-time head fusion/pad
    mu, cov = gauss_dynamics_forward(x, packed)      # single grid step at B=16
    mu = jax.block_until_ready(mu)
    cov = jax.block_until_ready(cov)

    mu_ref, cov_ref = ref_forward(x, params)
    assert mu.shape == (batch, output_dims)
    assert cov.shape == (batch, output_dims, output_dims)
    assert jnp.allclose(mu, mu_ref, atol=1e-5, rtol=1e-4)
    assert jnp.allclose(cov, cov_ref, atol=1e-5, rtol=1e-4)

    print("KERNEL_OK")
</pallas_src>

<mosaic_0001>
module attributes {stable_mosaic.version = 11 : i64} {
  func.func @gauss_dynamics_kernel(%arg0: i32, %arg1: memref<16x16xf32, #tpu.memory_space<vmem>>, %arg2: memref<16x32xf32, #tpu.memory_space<vmem>>, %arg3: memref<1x32xf32, #tpu.memory_space<vmem>>, %arg4: memref<32x128xf32, #tpu.memory_space<vmem>>, %arg5: memref<1x128xf32, #tpu.memory_space<vmem>>, %arg6: memref<16x128xf32, #tpu.memory_space<vmem>>) attributes {dimension_semantics = [#tpu.dimension_semantics<parallel>], iteration_bounds = array<i64: 1>, scalar_prefetch = 0 : i64, scratch_operands = 0 : i64, tpu.core_type = #tpu.core_type<tc>, window_params = [{transform_indices = @transform_0, window_bounds = array<i64: 16, 16>}, {pipeline_mode = #tpu.pipeline_mode<synchronous>, transform_indices = @transform_1, window_bounds = array<i64: 16, 32>}, {pipeline_mode = #tpu.pipeline_mode<synchronous>, transform_indices = @transform_2, window_bounds = array<i64: 1, 32>}, {pipeline_mode = #tpu.pipeline_mode<synchronous>, transform_indices = @transform_3, window_bounds = array<i64: 32, 128>}, {pipeline_mode = #tpu.pipeline_mode<synchronous>, transform_indices = @transform_4, window_bounds = array<i64: 1, 128>}, {transform_indices = @transform_5, window_bounds = array<i64: 16, 128>}]} {
    %c0 = arith.constant 0 : index
    %c0_0 = arith.constant 0 : index
    %0 = vector.load %arg1[%c0, %c0_0] : memref<16x16xf32, #tpu.memory_space<vmem>>, vector<16x16xf32>
    %c0_1 = arith.constant 0 : index
    %c0_2 = arith.constant 0 : index
    %1 = vector.load %arg2[%c0_1, %c0_2] : memref<16x32xf32, #tpu.memory_space<vmem>>, vector<16x32xf32>
    %cst = arith.constant dense<0.000000e+00> : vector<16x32xf32>
    %2 = tpu.matmul %0, %1, %cst {dimension_numbers = #tpu.dot_dimension_numbers<[1], [0], [0], [1], [0, 0, 1, 1], [], []>} : vector<16x16xf32>, vector<16x32xf32>, vector<16x32xf32> -> vector<16x32xf32>
    %c0_3 = arith.constant 0 : index
    %c0_4 = arith.constant 0 : index
    %3 = vector.load %arg3[%c0_3, %c0_4] : memref<1x32xf32, #tpu.memory_space<vmem>>, vector<1x32xf32>
    %4 = vector.broadcast %3 : vector<1x32xf32> to vector<16x32xf32>
    %5 = arith.addf %2, %4 : vector<16x32xf32>
    %cst_5 = arith.constant 0.000000e+00 : f32
    %6 = vector.broadcast %cst_5 : f32 to vector<16x32xf32>
    %7 = arith.maximumf %5, %6 : vector<16x32xf32>
    %c0_6 = arith.constant 0 : index
    %c0_7 = arith.constant 0 : index
    %8 = vector.load %arg4[%c0_6, %c0_7] : memref<32x128xf32, #tpu.memory_space<vmem>>, vector<32x128xf32>
    %cst_8 = arith.constant dense<0.000000e+00> : vector<16x128xf32>
    %9 = tpu.matmul %7, %8, %cst_8 {dimension_numbers = #tpu.dot_dimension_numbers<[1], [0], [0], [1], [0, 0, 1, 1], [], []>} : vector<16x32xf32>, vector<32x128xf32>, vector<16x128xf32> -> vector<16x128xf32>
    %c0_9 = arith.constant 0 : index
    %c0_10 = arith.constant 0 : index
    %10 = vector.load %arg5[%c0_9, %c0_10] : memref<1x128xf32, #tpu.memory_space<vmem>>, vector<1x128xf32>
    %11 = vector.broadcast %10 : vector<1x128xf32> to vector<16x128xf32>
    %12 = arith.addf %9, %11 : vector<16x128xf32>
    %13 = tpu.iota {dimensions = array<i32: 1>} : vector<16x128xi32>
    %c8_i32 = arith.constant 8 : i32
    %14 = vector.broadcast %c8_i32 : i32 to vector<16x128xi32>
    %15 = arith.cmpi slt, %13, %14 : vector<16x128xi32>
    %cst_11 = arith.constant 0.000000e+00 : f32
    %16 = vector.broadcast %cst_11 : f32 to vector<16x128xf32>
    %17 = arith.maximumf %12, %16 : vector<16x128xf32>
    %18 = arith.negf %12 : vector<16x128xf32>
    %19 = math.exp %18 : vector<16x128xf32>
    %cst_12 = arith.constant 1.000000e+00 : f32
    %20 = vector.broadcast %cst_12 : f32 to vector<16x128xf32>
    %21 = arith.addf %20, %19 : vector<16x128xf32>
    %22 = arith.divf %20, %21 : vector<16x128xf32>
    %23 = math.exp %22 : vector<16x128xf32>
    %24 = arith.select %15, %17, %23 : vector<16x128xi1>, vector<16x128xf32>
    %c0_13 = arith.constant 0 : index
    %c0_14 = arith.constant 0 : index
    %25 = vector.load %arg6[%c0_13, %c0_14] : memref<16x128xf32, #tpu.memory_space<vmem>>, vector<16x128xf32>
    tpu.vector_store %arg6[%c0_13, %c0_14], %24 {strides = array<i32>} : memref<16x128xf32, #tpu.memory_space<vmem>>, vector<16x128xf32>,
    return
  }
  func.func @transform_0(%arg0: i32) -> (i32, i32) {
    %c0_i32 = arith.constant 0 : i32
    %c0_i32_0 = arith.constant 0 : i32
    return %arg0, %c0_i32 : i32, i32
  }
  func.func @transform_1(%arg0: i32) -> (i32, i32) {
    %c0_i32 = arith.constant 0 : i32
    %c0_i32_0 = arith.constant 0 : i32
    %c0_i32_1 = arith.constant 0 : i32
    return %c0_i32, %c0_i32_0 : i32, i32
  }
  func.func @transform_2(%arg0: i32) -> (i32, i32) {
    %c0_i32 = arith.constant 0 : i32
    %c0_i32_0 = arith.constant 0 : i32
    %c0_i32_1 = arith.constant 0 : i32
    return %c0_i32, %c0_i32_0 : i32, i32
  }
  func.func @transform_3(%arg0: i32) -> (i32, i32) {
    %c0_i32 = arith.constant 0 : i32
    %c0_i32_0 = arith.constant 0 : i32
    %c0_i32_1 = arith.constant 0 : i32
    return %c0_i32, %c0_i32_0 : i32, i32
  }
  func.func @transform_4(%arg0: i32) -> (i32, i32) {
    %c0_i32 = arith.constant 0 : i32
    %c0_i32_0 = arith.constant 0 : i32
    %c0_i32_1 = arith.constant 0 : i32
    return %c0_i32, %c0_i32_0 : i32, i32
  }
  func.func @transform_5(%arg0: i32) -> (i32, i32) {
    %c0_i32 = arith.constant 0 : i32
    %c0_i32_0 = arith.constant 0 : i32
    return %arg0, %c0_i32 : i32, i32
  }
}

</mosaic_0001>

<llo_original>
// kernel: tpu_custom_call.1
$region0: #{tpu_custom_call.1}
  #allocation0 [shape = 'u32[]', space=smem, size = 0x4, offset = 0x4, fixed_abs, tag = 'smem constant byte address 0x4 - core index']
  #allocation1 [shape = 'u32[144,128]{1,0:T(1,128)}', space=vmem, size = 0x12000, scoped, tag = 'internal scratch']
  %s0 = inlined_call_operand.hbm [shape: f32[16,16], index: 0, kind: input, shape index: {}]
  %s1 = inlined_call_operand.hbm [shape: f32[16,32], index: 1, kind: input, shape index: {}]
  %s2 = inlined_call_operand.vmem [shape: f32[1,32], index: 2, kind: input, shape index: {}]
  %s3 = inlined_call_operand.hbm [shape: f32[32,128], index: 3, kind: input, shape index: {}]
  %s4 = inlined_call_operand.vmem [shape: f32[1,128], index: 4, kind: input, shape index: {}]
  %s5 = inlined_call_operand.hbm [shape: f32[16,128], index: 5, kind: output, shape index: {}]
  %s6 = sld [smem:[#allocation0]]
  $region42: #{tpu_custom_call.1} parent=0
    _
  %s8 = ssub.s32 1, %s6
  %s9 = scalar_select 0, %s8, %s6
  $region1: #{tpu_custom_call.1} parent=0
    #allocation2 [shape = 'u8[8192]{0}', space=vmem, size = 0x2000, scoped, tag = 'input window, operand 0, single buffered']
    #allocation3 [shape = 's32[1]{0}', space=sflag, size = 0x4, scoped, tag = 'scoped memory for tpu_custom_call.1']
    #allocation4 [shape = 's32[1]{0}', space=sflag, size = 0x4, scoped, tag = 'scoped memory for tpu_custom_call.1']
    #allocation5 [shape = 'u8[8192]{0}', space=vmem, size = 0x2000, scoped, tag = 'input window, operand 1, single buffered']
    #allocation6 [shape = 's32[1]{0}', space=sflag, size = 0x4, scoped, tag = 'scoped memory for tpu_custom_call.1']
    #allocation7 [shape = 'u8[16384]{0}', space=vmem, size = 0x4000, scoped, tag = 'input window, operand 3, single buffered']
    #allocation8 [shape = 'u8[8192]{0}', space=vmem, size = 0x2000, scoped, tag = 'output window, operand 0, single buffered']
    %10 = vsyncpa [#allocation3], 0
    %11 = vsyncpa [#allocation6], 0
    %12 = vsyncpa [#allocation4], 0
    // Predicated region
    $region2: #{tpu_custom_call.1} parent=1 // pred_check
      _
    $region3: #{tpu_custom_call.1} parent=1 // pred_check_branch
      %14 = sbr.rel (0) target = $region5
    $region4: #{tpu_custom_call.1} parent=1 // pred_region
      %s16 = ssub.s32 256, 256
      %17 = vsyncadd [#allocation3], %s16
      %s18 = sshll.u32 [#allocation2], 4
      %s19 = int_to_ptr.vmem [resolvable:$true] %s18
      %24 = dma.hbm_to_vmem [thread:$0]  %s0, 256, %s19, [#allocation3], 128, 128, 8
    $region5: #{tpu_custom_call.1} parent=1 // pred_fallthru
      _
    // Predicated region
    $region6: #{tpu_custom_call.1} parent=1 // pred_check
      _
    $region7: #{tpu_custom_call.1} parent=1 // pred_check_branch
      %26 = sbr.rel (0) target = $region9
    $region8: #{tpu_custom_call.1} parent=1 // pred_region
      %s28 = ssub.s32 256, 256
      %29 = vsyncadd [#allocation6], %s28
      %s30 = sshll.u32 [#allocation5], 4
      %s31 = int_to_ptr.vmem [resolvable:$true] %s30
      %36 = dma.hbm_to_vmem [thread:$0]  %s1, 256, %s31, [#allocation6], 128, 128, 8
    $region9: #{tpu_custom_call.1} parent=1 // pred_fallthru
      _
    // Predicated region
    $region10: #{tpu_custom_call.1} parent=1 // pred_check
      _
    $region11: #{tpu_custom_call.1} parent=1 // pred_check_branch
      %38 = sbr.rel (0) target = $region13
    $region12: #{tpu_custom_call.1} parent=1 // pred_region
      _
    $region13: #{tpu_custom_call.1} parent=1 // pred_fallthru
      _
    // Predicated region
    $region14: #{tpu_custom_call.1} parent=1 // pred_check
      _
    $region15: #{tpu_custom_call.1} parent=1 // pred_check_branch
      %40 = sbr.rel (0) target = $region17
    $region16: #{tpu_custom_call.1} parent=1 // pred_region
      %s42 = ssub.s32 512, 512
      %43 = vsyncadd [#allocation6], %s42
      %s44 = sshll.u32 [#allocation7], 4
      %s45 = int_to_ptr.vmem [resolvable:$true] %s44
      %50 = dma.hbm_to_vmem [thread:$0]  %s3, 512, %s45, [#allocation6], 128, 128, 8
    $region17: #{tpu_custom_call.1} parent=1 // pred_fallthru
      _
    // Predicated region
    $region18: #{tpu_custom_call.1} parent=1 // pred_check
      _
    $region19: #{tpu_custom_call.1} parent=1 // pred_check_branch
      %52 = sbr.rel (0) target = $region21
    $region20: #{tpu_custom_call.1} parent=1 // pred_region
      _
    $region21: #{tpu_custom_call.1} parent=1 // pred_fallthru
      _
    // Predicated region
    $region22: #{tpu_custom_call.1} parent=1 // pred_check
      _
    $region23: #{tpu_custom_call.1} parent=1 // pred_check_branch
      %54 = sbr.rel (0) target = $region25
    $region24: #{tpu_custom_call.1} parent=1 // pred_region
      %55 = dma.done [#allocation3], 256
    $region25: #{tpu_custom_call.1} parent=1 // pred_fallthru
      _
    // Predicated region
    $region26: #{tpu_custom_call.1} parent=1 // pred_check
      _
    $region27: #{tpu_custom_call.1} parent=1 // pred_check_branch
      %57 = sbr.rel (0) target = $region29
    $region28: #{tpu_custom_call.1} parent=1 // pred_region
      %58 = dma.done [#allocation6], 256
    $region29: #{tpu_custom_call.1} parent=1 // pred_fallthru
      _
    // Predicated region
    $region30: #{tpu_custom_call.1} parent=1 // pred_check
      _
    $region31: #{tpu_custom_call.1} parent=1 // pred_check_branch
      %60 = sbr.rel (0) target = $region33
    $region32: #{tpu_custom_call.1} parent=1 // pred_region
      %61 = dma.done [#allocation6], 512
    $region33: #{tpu_custom_call.1} parent=1 // pred_fallthru
      _
    %v62 = vld [vmem:[#allocation2] sm:$0xff]
    %v63 = vld [vmem:[#allocation2 + $0x8] sm:$0xff]
    %v64 = vld [vmem:[#allocation5] sm:$0xff]
    %v65 = vld [vmem:[#allocation5 + $0x8] sm:$0xff]
    %v66 = vld [vmem:[%s2] sm:$0x1]
    %v68 = vlaneseq
    %v69 = vshrl.u32 %v68, 7
    %v70 = vsub.s32 0, %v69
    %v71 = vrot.slane %v66, %v70
    %vm73 = vcmask 130048
    %v75 = vsel %vm73, %v62, 0
    %v78 = vsel %vm73, %v63, 0
    %80 = vmatprep.subr.mxu0 0.0
    %81 = vmatpush1.msra.mxu0 0.0
    %82 = vmatprep.subr.mxu0 0.0
    %83 = vmatpush1.msra.mxu0 0.0
    %84 = vmatprep.subr.mxu0 0.0
    %85 = vmatpush1.msra.mxu0 0.0
    %86 = vmatprep.subr.mxu0 0.0
    %87 = vmatpush1.msra.mxu0 0.0
    %88 = vmatprep.subr.mxu0 0.0
    %89 = vmatpush1.msra.mxu0 0.0
    %90 = vmatprep.subr.mxu0 0.0
    %91 = vmatpush1.msra.mxu0 0.0
    %92 = vmatprep.subr.mxu0 0.0
    %93 = vmatpush1.msra.mxu0 0.0
    %94 = vmatprep.subr.mxu0 0.0
    %95 = vmatpush1.msra.mxu0 0.0
    %96 = vmatprep.subr.mxu0 0.0
    %97 = vmatpush1.msra.mxu0 0.0
    %98 = vmatprep.subr.mxu0 0.0
    %99 = vmatpush1.msra.mxu0 0.0
    %100 = vmatprep.subr.mxu0 0.0
    %101 = vmatpush1.msra.mxu0 0.0
    %102 = vmatprep.subr.mxu0 0.0
    %103 = vmatpush1.msra.mxu0 0.0
    %104 = vmatprep.subr.mxu0 0.0
    %105 = vmatpush1.msra.mxu0 0.0
    %106 = vmatprep.subr.mxu0 0.0
    %107 = vmatpush1.msra.mxu0 0.0
    %108 = vmatprep.subr.mxu0 0.0
    %109 = vmatpush1.msra.mxu0 %v65
    %110 = vmatprep.subr.mxu0 0.0
    %111 = vmatpush1.msra.mxu0 %v64
    %112 = vmatprep.subr.mxu0 0.0
    %113 = vmatpush2.msra.mxu0 0.0
    %114 = vmatprep.subr.mxu0 0.0
    %115 = vmatpush2.msra.mxu0 0.0
    %116 = vmatprep.subr.mxu0 0.0
    %117 = vmatpush2.msra.mxu0 0.0
    %118 = vmatprep.subr.mxu0 0.0
    %119 = vmatpush2.msra.mxu0 0.0
    %120 = vmatprep.subr.mxu0 0.0
    %121 = vmatpush2.msra.mxu0 0.0
    %122 = vmatprep.subr.mxu0 0.0
    %123 = vmatpush2.msra.mxu0 0.0
    %124 = vmatprep.subr.mxu0 0.0
    %125 = vmatpush2.msra.mxu0 0.0
    %126 = vmatprep.subr.mxu0 0.0
    %127 = vmatpush2.msra.mxu0 0.0
    %128 = vmatprep.subr.mxu0 0.0
    %129 = vmatpush2.msra.mxu0 0.0
    %130 = vmatprep.subr.mxu0 0.0
    %131 = vmatpush2.msra.mxu0 0.0
    %132 = vmatprep.subr.mxu0 0.0
    %133 = vmatpush2.msra.mxu0 0.0
    %134 = vmatprep.subr.mxu0 0.0
    %135 = vmatpush2.msra.mxu0 0.0
    %136 = vmatprep.subr.mxu0 0.0
    %137 = vmatpush2.msra.mxu0 0.0
    %138 = vmatprep.subr.mxu0 0.0
    %139 = vmatpush2.msra.mxu0 0.0
    %140 = vmatprep.subr.mxu0 0.0
    %141 = vmatpush2.msra.mxu0 0.0
    %142 = vmatprep.subr.mxu0 0.0
    %143 = vmatpush2.msra.mxu0 0.0
    %144 = vmatprep.mubr.f32.mxu0 0.0
    %145 = vmatmul.mubr.f32.gmra.mxu0 %v75
    %v146 = vpop.f32.mrf.mxu0
    %v147 = vadd.f32 %v71, %v146
    %v148 = vpop.f32.mrf.mxu0
    %149 = vmatprep.mubr.f32.mxu0 0.0
    %150 = vmatmul.mubr.f32.gmra.mxu0 %v78
    %v151 = vpop.f32.mrf.mxu0
    %v152 = vadd.f32 %v71, %v151
    %v153 = vpop.f32.mrf.mxu0
    %154 = vdwg.mxu0
    %v155 = vmax.f32 %v147, 0.0
    %v156 = vmax.f32 %v152, 0.0
    %v157 = vld [vmem:[#allocation7] sm:$0xff]
    %v158 = vld [vmem:[#allocation7 + $0x8] sm:$0xff]
    %v159 = vld [vmem:[#allocation7 + $0x10] sm:$0xff]
    %v160 = vld [vmem:[#allocation7 + $0x18] sm:$0xff]
    %v161 = vld [vmem:[%s4] sm:$0x1]
    %v163 = vlaneseq
    %v164 = vshrl.u32 %v163, 7
    %v165 = vsub.s32 0, %v164
    %v166 = vrot.slane %v161, %v165
    %vm168 = vcmask 261120
    %v170 = vsel %vm168, %v155, 0
    %v173 = vsel %vm168, %v156, 0
    %175 = vmatprep.subr.mxu0 0.0
    %176 = vmatpush1.msra.mxu0 0.0
    %177 = vmatprep.subr.mxu0 0.0
    %178 = vmatpush1.msra.mxu0 0.0
    %179 = vmatprep.subr.mxu0 0.0
    %180 = vmatpush1.msra.mxu0 0.0
    %181 = vmatprep.subr.mxu0 0.0
    %182 = vmatpush1.msra.mxu0 0.0
    %183 = vmatprep.subr.mxu0 0.0
    %184 = vmatpush1.msra.mxu0 0.0
    %185 = vmatprep.subr.mxu0 0.0
    %186 = vmatpush1.msra.mxu0 0.0
    %187 = vmatprep.subr.mxu0 0.0
    %188 = vmatpush1.msra.mxu0 0.0
    %189 = vmatprep.subr.mxu0 0.0
    %190 = vmatpush1.msra.mxu0 0.0
    %191 = vmatprep.subr.mxu0 0.0
    %192 = vmatpush1.msra.mxu0 0.0
    %193 = vmatprep.subr.mxu0 0.0
    %194 = vmatpush1.msra.mxu0 0.0
    %195 = vmatprep.subr.mxu0 0.0
    %196 = vmatpush1.msra.mxu0 0.0
    %197 = vmatprep.subr.mxu0 0.0
    %198 = vmatpush1.msra.mxu0 0.0
    %199 = vmatprep.subr.mxu0 0.0
    %200 = vmatpush1.msra.mxu0 %v160
    %201 = vmatprep.subr.mxu0 0.0
    %202 = vmatpush1.msra.mxu0 %v159
    %203 = vmatprep.subr.mxu0 0.0
    %204 = vmatpush1.msra.mxu0 %v158
    %205 = vmatprep.subr.mxu0 0.0
    %206 = vmatpush1.msra.mxu0 %v157
    %207 = vmatprep.subr.mxu0 0.0
    %208 = vmatpush2.msra.mxu0 0.0
    %209 = vmatprep.subr.mxu0 0.0
    %210 = vmatpush2.msra.mxu0 0.0
    %211 = vmatprep.subr.mxu0 0.0
    %212 = vmatpush2.msra.mxu0 0.0
    %213 = vmatprep.subr.mxu0 0.0
    %214 = vmatpush2.msra.mxu0 0.0
    %215 = vmatprep.subr.mxu0 0.0
    %216 = vmatpush2.msra.mxu0 0.0
    %217 = vmatprep.subr.mxu0 0.0
    %218 = vmatpush2.msra.mxu0 0.0
    %219 = vmatprep.subr.mxu0 0.0
    %220 = vmatpush2.msra.mxu0 0.0
    %221 = vmatprep.subr.mxu0 0.0
    %222 = vmatpush2.msra.mxu0 0.0
    %223 = vmatprep.subr.mxu0 0.0
    %224 = vmatpush2.msra.mxu0 0.0
    %225 = vmatprep.subr.mxu0 0.0
    %226 = vmatpush2.msra.mxu0 0.0
    %227 = vmatprep.subr.mxu0 0.0
    %228 = vmatpush2.msra.mxu0 0.0
    %229 = vmatprep.subr.mxu0 0.0
    %230 = vmatpush2.msra.mxu0 0.0
    %231 = vmatprep.subr.mxu0 0.0
    %232 = vmatpush2.msra.mxu0 0.0
    %233 = vmatprep.subr.mxu0 0.0
    %234 = vmatpush2.msra.mxu0 0.0
    %235 = vmatprep.subr.mxu0 0.0
    %236 = vmatpush2.msra.mxu0 0.0
    %237 = vmatprep.subr.mxu0 0.0
    %238 = vmatpush2.msra.mxu0 0.0
    %239 = vmatprep.mubr.f32.mxu0 0.0
    %240 = vmatmul.mubr.f32.gmra.mxu0 %v170
    %v241 = vpop.f32.mrf.mxu0
    %v242 = vadd.f32 %v166, %v241
    %v243 = vpop.f32.mrf.mxu0
    %244 = vmatprep.mubr.f32.mxu0 0.0
    %245 = vmatmul.mubr.f32.gmra.mxu0 %v173
    %v246 = vpop.f32.mrf.mxu0
    %v247 = vadd.f32 %v166, %v246
    %v248 = vpop.f32.mrf.mxu0
    %249 = vdwg.mxu0
    %v250 = vlaneseq
    %v251 = vand.u32 %v250, 127
    %vm252 = vcmp.lt.s32.totalorder %v251, 8
    %v253 = vmax.f32 %v242, 0.0
    %v254 = vmax.f32 %v247, 0.0
    %v255 = vxor.u32 %v242, 2147483648
    %v256 = vxor.u32 %v247, 2147483648
    %v257 = vmul.f32 %v255, 1.442695
    %v258 = vpow.pop %v257
    %v259 = vmul.f32 %v256, 1.442695
    %v260 = vpow.pop %v259
    %v261 = vadd.f32 %v258, 1.0
    %v262 = vadd.f32 %v260, 1.0
    %v263 = vrcp.pop %v261
    %v264 = vmul.f32 1.0, %v263
    %v265 = vrcp.pop %v262
    %v266 = vmul.f32 1.0, %v265
    %v267 = vmul.f32 %v264, 1.442695
    %v268 = vpow.pop %v267
    %v269 = vmul.f32 %v266, 1.442695
    %v270 = vpow.pop %v269
    %v271 = vsel %vm252, %v253, %v268
    %v272 = vsel %vm252, %v254, %v270
    %273 = vst [vmem:[#allocation8] sm:$0xff] %v271
    %274 = vst [vmem:[#allocation8 + $0x8] sm:$0xff] %v272
    // Predicated region
    $region34: #{tpu_custom_call.1} parent=1 // pred_check
      _
    $region35: #{tpu_custom_call.1} parent=1 // pred_check_branch
      %276 = sbr.rel (0) target = $region37
    $region36: #{tpu_custom_call.1} parent=1 // pred_region
      %s278 = ssub.s32 256, 256
      %279 = vsyncadd [#allocation4], %s278
      %s280 = sshll.u32 [#allocation8], 4
      %s281 = int_to_ptr.vmem [resolvable:$true] %s280
      %286 = dma.vmem_to_hbm [thread:$0]  %s281, 256, %s5, [#allocation4], 128, 128, 8
    $region37: #{tpu_custom_call.1} parent=1 // pred_fallthru
      _
    // Predicated region
    $region38: #{tpu_custom_call.1} parent=1 // pred_check
      _
    $region39: #{tpu_custom_call.1} parent=1 // pred_check_branch
      %288 = sbr.rel (0) target = $region41
    $region40: #{tpu_custom_call.1} parent=1 // pred_region
      %289 = dma.done [#allocation4], 256
    $region41: #{tpu_custom_call.1} parent=1 // pred_fallthru
      _
    %290 = vsyncpa [#allocation3], 1
    %291 = vsyncpa [#allocation6], 1
    %292 = vsyncpa [#allocation4], 1

</llo_original>
